<compile_context>
chip_gen: v5e
topology: v5e:2x2
jax: 0.10.0
libtpu: 0.0.40
codegen_flags: <defaults>
</compile_context>

<pallas_src>
import numpy as np
import jax
import jax.numpy as jnp
from jax.experimental import pallas as pl
from jax.experimental.pallas import tpu as pltpu

POOL_SIZES = (1, 4, 8, 12)


# ----------------------------- host-side operator construction ---------------------------

def adaptive_avg_pool_matrix(out_size: int, in_size: int) -> np.ndarray:
    """P[i, h] s.t. (P @ x) == nn.AdaptiveAvgPool1d(out_size)(x)."""
    P = np.zeros((out_size, in_size), dtype=np.float32)
    for i in range(out_size):
        start = (i * in_size) // out_size
        end = -((-(i + 1) * in_size) // out_size)          # ceil((i+1)*in/out)
        P[i, start:end] = 1.0 / float(end - start)
    return P


def bilinear_upsample_matrix(out_size: int, in_size: int) -> np.ndarray:
    """U[i, s] for F.interpolate(..., mode='bilinear', align_corners=False) along one axis."""
    U = np.zeros((out_size, in_size), dtype=np.float32)
    scale = in_size / out_size
    for i in range(out_size):
        src = (i + 0.5) * scale - 0.5
        src = max(src, 0.0)                                 # PyTorch clamps negative coords
        i0 = min(int(np.floor(src)), in_size - 1)
        i1 = min(i0 + 1, in_size - 1)
        l1 = src - i0
        U[i, i0] += 1.0 - l1
        U[i, i1] += l1
    return U


def build_separable_lef_operators(C: int, H: int, W: int, pool_sizes=POOL_SIZES):
    """MH_cat (4H, H): row operators stacked; MW_BD (4, C*W, C*W): kron(I_C, mw_k^T)."""
    mh_list, mw_list = [], []
    for k in pool_sizes:
        mh_list.append(bilinear_upsample_matrix(H, k) @ adaptive_avg_pool_matrix(k, H))
        mw_list.append(bilinear_upsample_matrix(W, k) @ adaptive_avg_pool_matrix(k, W))
    mh_cat = np.concatenate(mh_list, axis=0).astype(np.float32)                  # (4H, H)
    mw_bd = np.stack(
        [np.kron(np.eye(C, dtype=np.float32), mw.T) for mw in mw_list]
    ).astype(np.float32)                                                          # (4, C*W, C*W)
    return mh_cat, mw_bd


# ----------------------------- Pallas kernel ---------------------------------------------

def lef_kernel(x_ref, mhcat_ref, mwbd_ref, o_ref):
    # x_ref:     (1, H, C*W)      x[b, h, c*W + w]
    # mhcat_ref: (4*H, H)         mh_k stacked along rows
    # mwbd_ref:  (4, C*W, C*W)    kron(I_C, mw_k^T)
    # o_ref:     (1, 4*H, C*W)    out[(k, i), (c, j)]
    xv = x_ref[0]                                           # (H, C*W)
    H = xv.shape[0]
    n_branches = mwbd_ref.shape[0]

    # Stage 1: contract H for all 4 branches in ONE MXU matmul.
    y = jnp.dot(mhcat_ref[...], xv, preferred_element_type=jnp.float32)   # (4H, C*W)

    # Stage 2: contract W per branch with a block-diagonal operator (no relayout needed).
    zs = []
    for k in range(n_branches):
        yk = y[k * H:(k + 1) * H, :]                        # static sublane slice (H, C*W)
        zs.append(jnp.dot(yk, mwbd_ref[k], preferred_element_type=jnp.float32))

    # One contiguous store per batch element.
    o_ref[0] = jnp.concatenate(zs, axis=0)                  # (4H, C*W)


def lef_forward(x_nchw, mh_cat, mw_bd):
    """NCHW in -> (B, 4C, H, W) out, channel order [pool1, pool4, pool8, pool12]."""
    B, C, H, W = x_nchw.shape
    CW = C * W
    nb = int(mw_bd.shape[0])

    # Layout plumbing (outside the kernel): x[b,c,h,w] -> xv[b, h, c*W + w]
    xv = jnp.transpose(x_nchw, (0, 2, 1, 3)).reshape(B, H, CW).astype(jnp.float32)

    flops = B * (2 * (nb * H) * H * CW + nb * 2 * H * CW * CW)
    bytes_accessed = 4 * (B * H * CW + nb * H * H + nb * CW * CW + B * nb * H * CW)

    out = pl.pallas_call(
        lef_kernel,
        out_shape=jax.ShapeDtypeStruct((B, nb * H, CW), jnp.float32),
        grid=(B,),
        in_specs=[
            pl.BlockSpec((1, H, CW), lambda b: (b, 0, 0)),
            pl.BlockSpec((nb * H, H), lambda b: (0, 0)),        # grid-invariant operator
            pl.BlockSpec((nb, CW, CW), lambda b: (0, 0, 0)),    # grid-invariant operator
        ],
        out_specs=pl.BlockSpec((1, nb * H, CW), lambda b: (b, 0, 0)),
        compiler_params=pltpu.CompilerParams(dimension_semantics=("parallel",)),
        cost_estimate=pl.CostEstimate(flops=int(flops), transcendentals=0,
                                      bytes_accessed=int(bytes_accessed)),
    )(xv, mh_cat, mw_bd)

    # out[b, k*H + i, c*W + j] -> (B, 4C, H, W)
    out = out.reshape(B, nb, H, C, W)
    out = jnp.transpose(out, (0, 1, 3, 2, 4)).reshape(B, nb * C, H, W)
    return out


# ----------------------------- pure-JAX reference (separate code path) -------------------

def reference(x, pool_sizes=POOL_SIZES):
    B, C, H, W = x.shape
    outs = []
    for k in pool_sizes:
        Ph = jnp.asarray(adaptive_avg_pool_matrix(k, H))
        Pw = jnp.asarray(adaptive_avg_pool_matrix(k, W))
        Uh = jnp.asarray(bilinear_upsample_matrix(H, k))
        Uw = jnp.asarray(bilinear_upsample_matrix(W, k))
        pooled = jnp.einsum('ph,bchw,qw->bcpq', Ph, x, Pw)     # adaptive avg pool
        up = jnp.einsum('ip,bcpq,jq->bcij', Uh, pooled, Uw)    # bilinear upsample
        outs.append(up)
    return jnp.concatenate(outs, axis=1)


# ----------------------------- main -------------------------------------------------------

if __name__ == "__main__":
    B, C, H, W = 2, 4, 16, 16

    key = jax.random.PRNGKey(0)
    x = jax.random.normal(key, (B, C, H, W), dtype=jnp.float32)

    mh_cat_np, mw_bd_np = build_separable_lef_operators(C, H, W)
    mh_cat = jnp.asarray(mh_cat_np)
    mw_bd = jnp.asarray(mw_bd_np)

    out = jax.block_until_ready(lef_forward(x, mh_cat, mw_bd))
    ref = jax.block_until_ready(reference(x))

    assert out.shape == (B, 4 * C, H, W), out.shape
    max_err = float(jnp.max(jnp.abs(out - ref)))
    assert max_err < 1e-3, f"mismatch vs reference: {max_err}"

    print("KERNEL_OK")
</pallas_src>

<mosaic_0001>
module attributes {stable_mosaic.version = 11 : i64} {
  func.func @lef_kernel(%arg0: i32, %arg1: memref<1x16x64xf32, #tpu.memory_space<vmem>>, %arg2: memref<64x16xf32, #tpu.memory_space<vmem>>, %arg3: memref<4x64x64xf32, #tpu.memory_space<vmem>>, %arg4: memref<1x64x64xf32, #tpu.memory_space<vmem>>) attributes {dimension_semantics = [#tpu.dimension_semantics<parallel>], iteration_bounds = array<i64: 2>, scalar_prefetch = 0 : i64, scratch_operands = 0 : i64, tpu.core_type = #tpu.core_type<tc>, window_params = [{transform_indices = @transform_0, window_bounds = array<i64: 1, 16, 64>}, {pipeline_mode = #tpu.pipeline_mode<synchronous>, transform_indices = @transform_1, window_bounds = array<i64: 64, 16>}, {pipeline_mode = #tpu.pipeline_mode<synchronous>, transform_indices = @transform_2, window_bounds = array<i64: 4, 64, 64>}, {transform_indices = @transform_3, window_bounds = array<i64: 1, 64, 64>}]} {
    %c0 = arith.constant 0 : index
    %c0_0 = arith.constant 0 : index
    %c0_1 = arith.constant 0 : index
    %0 = vector.load %arg1[%c0, %c0_0, %c0_1] : memref<1x16x64xf32, #tpu.memory_space<vmem>>, vector<1x16x64xf32>
    %1 = vector.shape_cast %0 : vector<1x16x64xf32> to vector<16x64xf32>
    %c0_2 = arith.constant 0 : index
    %c0_3 = arith.constant 0 : index
    %2 = vector.load %arg2[%c0_2, %c0_3] : memref<64x16xf32, #tpu.memory_space<vmem>>, vector<64x16xf32>
    %cst = arith.constant dense<0.000000e+00> : vector<64x64xf32>
    %3 = tpu.matmul %2, %1, %cst {dimension_numbers = #tpu.dot_dimension_numbers<[1], [0], [0], [1], [0, 0, 1, 1], [], []>} : vector<64x16xf32>, vector<16x64xf32>, vector<64x64xf32> -> vector<64x64xf32>
    %4 = vector.extract_strided_slice %3 {offsets = [0, 0], sizes = [16, 64], strides = [1, 1]} : vector<64x64xf32> to vector<16x64xf32>
    %c0_4 = arith.constant 0 : index
    %c0_5 = arith.constant 0 : index
    %c0_6 = arith.constant 0 : index
    %5 = vector.load %arg3[%c0_4, %c0_5, %c0_6] : memref<4x64x64xf32, #tpu.memory_space<vmem>>, vector<1x64x64xf32>
    %6 = vector.shape_cast %5 : vector<1x64x64xf32> to vector<64x64xf32>
    %cst_7 = arith.constant dense<0.000000e+00> : vector<16x64xf32>
    %7 = tpu.matmul %4, %6, %cst_7 {dimension_numbers = #tpu.dot_dimension_numbers<[1], [0], [0], [1], [0, 0, 1, 1], [], []>} : vector<16x64xf32>, vector<64x64xf32>, vector<16x64xf32> -> vector<16x64xf32>
    %8 = vector.extract_strided_slice %3 {offsets = [16, 0], sizes = [16, 64], strides = [1, 1]} : vector<64x64xf32> to vector<16x64xf32>
    %c1 = arith.constant 1 : index
    %c0_8 = arith.constant 0 : index
    %c0_9 = arith.constant 0 : index
    %9 = vector.load %arg3[%c1, %c0_8, %c0_9] : memref<4x64x64xf32, #tpu.memory_space<vmem>>, vector<1x64x64xf32>
    %10 = vector.shape_cast %9 : vector<1x64x64xf32> to vector<64x64xf32>
    %cst_10 = arith.constant dense<0.000000e+00> : vector<16x64xf32>
    %11 = tpu.matmul %8, %10, %cst_10 {dimension_numbers = #tpu.dot_dimension_numbers<[1], [0], [0], [1], [0, 0, 1, 1], [], []>} : vector<16x64xf32>, vector<64x64xf32>, vector<16x64xf32> -> vector<16x64xf32>
    %12 = vector.extract_strided_slice %3 {offsets = [32, 0], sizes = [16, 64], strides = [1, 1]} : vector<64x64xf32> to vector<16x64xf32>
    %c2 = arith.constant 2 : index
    %c0_11 = arith.constant 0 : index
    %c0_12 = arith.constant 0 : index
    %13 = vector.load %arg3[%c2, %c0_11, %c0_12] : memref<4x64x64xf32, #tpu.memory_space<vmem>>, vector<1x64x64xf32>
    %14 = vector.shape_cast %13 : vector<1x64x64xf32> to vector<64x64xf32>
    %cst_13 = arith.constant dense<0.000000e+00> : vector<16x64xf32>
    %15 = tpu.matmul %12, %14, %cst_13 {dimension_numbers = #tpu.dot_dimension_numbers<[1], [0], [0], [1], [0, 0, 1, 1], [], []>} : vector<16x64xf32>, vector<64x64xf32>, vector<16x64xf32> -> vector<16x64xf32>
    %16 = vector.extract_strided_slice %3 {offsets = [48, 0], sizes = [16, 64], strides = [1, 1]} : vector<64x64xf32> to vector<16x64xf32>
    %c3 = arith.constant 3 : index
    %c0_14 = arith.constant 0 : index
    %c0_15 = arith.constant 0 : index
    %17 = vector.load %arg3[%c3, %c0_14, %c0_15] : memref<4x64x64xf32, #tpu.memory_space<vmem>>, vector<1x64x64xf32>
    %18 = vector.shape_cast %17 : vector<1x64x64xf32> to vector<64x64xf32>
    %cst_16 = arith.constant dense<0.000000e+00> : vector<16x64xf32>
    %19 = tpu.matmul %16, %18, %cst_16 {dimension_numbers = #tpu.dot_dimension_numbers<[1], [0], [0], [1], [0, 0, 1, 1], [], []>} : vector<16x64xf32>, vector<64x64xf32>, vector<16x64xf32> -> vector<16x64xf32>
    %20 = tpu.concatenate %7, %11, %15, %19 in 0 : vector<16x64xf32>, vector<16x64xf32>, vector<16x64xf32>, vector<16x64xf32> -> vector<64x64xf32>
    %c0_17 = arith.constant 0 : index
    %c0_18 = arith.constant 0 : index
    %c0_19 = arith.constant 0 : index
    %21 = vector.load %arg4[%c0_17, %c0_18, %c0_19] : memref<1x64x64xf32, #tpu.memory_space<vmem>>, vector<1x64x64xf32>
    %22 = vector.shape_cast %21 : vector<1x64x64xf32> to vector<64x64xf32>
    %23 = vector.shape_cast %20 : vector<64x64xf32> to vector<1x64x64xf32>
    tpu.vector_store %arg4[%c0_17, %c0_18, %c0_19], %23 {strides = array<i32>} : memref<1x64x64xf32, #tpu.memory_space<vmem>>, vector<1x64x64xf32>,
    return
  }
  func.func @transform_0(%arg0: i32) -> (i32, i32, i32) {
    %c0_i32 = arith.constant 0 : i32
    %c0_i32_0 = arith.constant 0 : i32
    %c0_i32_1 = arith.constant 0 : i32
    return %arg0, %c0_i32, %c0_i32_0 : i32, i32, i32
  }
  func.func @transform_1(%arg0: i32) -> (i32, i32) {
    %c0_i32 = arith.constant 0 : i32
    %c0_i32_0 = arith.constant 0 : i32
    %c0_i32_1 = arith.constant 0 : i32
    return %c0_i32, %c0_i32_0 : i32, i32
  }
  func.func @transform_2(%arg0: i32) -> (i32, i32, i32) {
    %c0_i32 = arith.constant 0 : i32
    %c0_i32_0 = arith.constant 0 : i32
    %c0_i32_1 = arith.constant 0 : i32
    %c0_i32_2 = arith.constant 0 : i32
    return %c0_i32, %c0_i32_0, %c0_i32_1 : i32, i32, i32
  }
  func.func @transform_3(%arg0: i32) -> (i32, i32, i32) {
    %c0_i32 = arith.constant 0 : i32
    %c0_i32_0 = arith.constant 0 : i32
    %c0_i32_1 = arith.constant 0 : i32
    return %arg0, %c0_i32, %c0_i32_0 : i32, i32, i32
  }
}

</mosaic_0001>

<llo_original>
// kernel: tpu_custom_call.1
$region0: #{tpu_custom_call.1}
  #allocation0 [shape = 'u32[]', space=smem, size = 0x4, offset = 0x4, fixed_abs, tag = 'smem constant byte address 0x4 - core index']
  #allocation1 [shape = 'u32[72,128]{1,0:T(1,128)}', space=vmem, size = 0x9000, scoped, tag = 'internal scratch']
  %s0 = inlined_call_operand.vmem [shape: f32[2,16,64], index: 0, kind: input, shape index: {}]
  %s1 = inlined_call_operand.vmem [shape: f32[64,16], index: 1, kind: input, shape index: {}]
  %s2 = inlined_call_operand.hbm [shape: f32[4,64,64], index: 2, kind: input, shape index: {}]
  %s3 = inlined_call_operand.hbm [shape: f32[2,64,64], index: 3, kind: output, shape index: {}]
  %s4 = sld [smem:[#allocation0]]
  $region49: #{tpu_custom_call.1} parent=0
    _
  %s6 = ssub.s32 1, %s4
  %s7 = scalar_select 0, %s6, %s4
  $region1: #{tpu_custom_call.1} parent=0
    #allocation2 [shape = 'u8[131072]{0}', space=vmem, size = 0x20000, scoped, tag = 'input window, operand 2, single buffered']
    #allocation3 [shape = 's32[2]{0}', space=sflag, size = 0x8, scoped, tag = 'scoped memory for tpu_custom_call.1']
    #allocation4 [shape = 's32[2]{0}', space=sflag, size = 0x8, scoped, tag = 'scoped memory for tpu_custom_call.1']
    #allocation5 [shape = 'u8[65536]{0}', space=vmem, size = 0x10000, scoped, tag = 'output window, operand 0']
    %8 = vsyncpa [#allocation3], 0
    %9 = vsyncpa [#allocation4], 0
    %s10 = scalar_lea.sflag [#allocation4], 1
    %11 = vsyncpa %s10, 0
    loop: start=0, step=1, limit=4
    $region2: #{tpu_custom_call.1} parent=1 // loop_pre_header
      _
    $region3: #{tpu_custom_call.1} parent=1 // loop_header
      %s13 = sphi 0, %s17
      %p14 = scmp.ge.s32.totalorder %s13, 4
      %s23 = sphi 0, %s25
      %s26 = sphi 0, %s23
      %s27 = sphi 0, %s26
      %s43 = sphi 0, %s27
      %s47 = sphi 0, %s47
      %s49 = sphi 0, %s47
      %s50 = sphi 0, %s49
      %s64 = sphi 0, %s50
      %s68 = sphi 0, %s68
      %s70 = sphi 0, %s68
      %s71 = sphi 0, %s70
      %s85 = sphi 0, %s71
      %s91 = sphi 0, %s93
      %s94 = sphi 0, %s91
      %s95 = sphi 0, %s94
      %s111 = sphi 0, %s95
    $region4: #{tpu_custom_call.1} parent=1 // loop_header_branch
      %16 = sbr.rel (%p14) target = $region8
    $region5: #{tpu_custom_call.1} parent=1 // loop_body
      %s18 = ssub.s32 %s13, 1
      %s19 = ssub.s32 %s13, 2
      %s20 = sadd.s32 %s13, 1
      %s21 = ssub.s32 %s13, %s20
      %p22 = scmp.eq.s32.totalorder %s21, 0
      %s24 = sadd.s32 %s23, 1
      %s25 = scalar_select %p22, %s23, %s24
      %p28 = pneg %p22
      %p29 = scmp.eq.s32.totalorder %s13, 1
      %p30 = por %p28, %p29
      %p31 = scmp.ne.s32.totalorder %s23, %s26
      %p32 = scmp.eq.s32.totalorder %s13, 0
      %p33 = por %p31, %p32
      %p34 = scmp.ne.s32.totalorder %s23, %s26
      %p35 = scmp.eq.s32.totalorder %s18, 1
      %p36 = por %p34, %p35
      %p37 = scmp.ne.s32.totalorder %s26, %s27
      %p38 = scmp.eq.s32.totalorder %s18, 0
      %p39 = por %p37, %p38
      %p40 = scmp.ne.s32.totalorder %s26, %s27
      %p41 = scmp.eq.s32.totalorder %s19, 1
      %p42 = por %p40, %p41
      %p44 = scmp.ne.s32.totalorder %s27, %s43
      %p45 = scmp.eq.s32.totalorder %s19, 0
      %p46 = por %p44, %p45
      %s48 = sadd.s32 %s47, 1
      %p51 = scmp.eq.s32.totalorder %s13, 1
      %p52 = scmp.ne.s32.totalorder %s47, %s49
      %p53 = scmp.eq.s32.totalorder %s13, 0
      %p54 = por %p52, %p53
      %p55 = scmp.ne.s32.totalorder %s47, %s49
      %p56 = scmp.eq.s32.totalorder %s18, 1
      %p57 = por %p55, %p56
      %p58 = scmp.ne.s32.totalorder %s49, %s50
      %p59 = scmp.eq.s32.totalorder %s18, 0
      %p60 = por %p58, %p59
      %p61 = scmp.ne.s32.totalorder %s49, %s50
      %p62 = scmp.eq.s32.totalorder %s19, 1
      %p63 = por %p61, %p62
      %p65 = scmp.ne.s32.totalorder %s50, %s64
      %p66 = scmp.eq.s32.totalorder %s19, 0
      %p67 = por %p65, %p66
      %s69 = sadd.s32 %s68, 1
      %p72 = scmp.eq.s32.totalorder %s13, 1
      %p73 = scmp.ne.s32.totalorder %s68, %s70
      %p74 = scmp.eq.s32.totalorder %s13, 0
      %p75 = por %p73, %p74
      %p76 = scmp.ne.s32.totalorder %s68, %s70
      %p77 = scmp.eq.s32.totalorder %s18, 1
      %p78 = por %p76, %p77
      %p79 = scmp.ne.s32.totalorder %s70, %s71
      %p80 = scmp.eq.s32.totalorder %s18, 0
      %p81 = por %p79, %p80
      %p82 = scmp.ne.s32.totalorder %s70, %s71
      %p83 = scmp.eq.s32.totalorder %s19, 1
      %p84 = por %p82, %p83
      %p86 = scmp.ne.s32.totalorder %s71, %s85
      %p87 = scmp.eq.s32.totalorder %s19, 0
      %p88 = por %p86, %p87
      %s89 = ssub.s32 %s13, %s20
      %p90 = scmp.eq.s32.totalorder %s89, 0
      %s92 = sadd.s32 %s91, 1
      %s93 = scalar_select %p90, %s91, %s92
      %p96 = pneg %p90
      %p97 = scmp.eq.s32.totalorder %s13, 1
      %p98 = por %p96, %p97
      %p99 = scmp.ne.s32.totalorder %s91, %s94
      %p100 = scmp.eq.s32.totalorder %s13, 0
      %p101 = por %p99, %p100
      %p102 = scmp.ne.s32.totalorder %s91, %s94
      %p103 = scmp.eq.s32.totalorder %s18, 1
      %p104 = por %p102, %p103
      %p105 = scmp.ne.s32.totalorder %s94, %s95
      %p106 = scmp.eq.s32.totalorder %s18, 0
      %p107 = por %p105, %p106
      %p108 = scmp.ne.s32.totalorder %s94, %s95
      %p109 = scmp.eq.s32.totalorder %s19, 1
      %p110 = por %p108, %p109
      %p112 = scmp.ne.s32.totalorder %s95, %s111
      %p113 = scmp.eq.s32.totalorder %s19, 0
      %p114 = por %p112, %p113
      %p115 = scmp.le.s32.totalorder 1, %s13
      %p116 = scmp.lt.s32.totalorder %s13, 3
      %p117 = pnand %p115, %p116
      %p118 = pneg %p117
      // Predicated region
      $region9: #{tpu_custom_call.1} parent=5 // pred_check
        _
      $region10: #{tpu_custom_call.1} parent=5 // pred_check_branch
        %120 = sbr.rel (%p117) target = $region12
      $region11: #{tpu_custom_call.1} parent=5 // pred_region
        %s121 = ssub.s32 %s13, 1
        // Predicated region
        $region13: #{tpu_custom_call.1} parent=11 // pred_check
          %p122 = pneg %p60
        $region14: #{tpu_custom_call.1} parent=11 // pred_check_branch
          %124 = sbr.rel (%p122) target = $region16
        $region15: #{tpu_custom_call.1} parent=11 // pred_region
          _
        $region16: #{tpu_custom_call.1} parent=11 // pred_fallthru
          _
        // Predicated region
        $region17: #{tpu_custom_call.1} parent=11 // pred_check
          %p125 = pneg %p81
        $region18: #{tpu_custom_call.1} parent=11 // pred_check_branch
          %127 = sbr.rel (%p125) target = $region20
        $region19: #{tpu_custom_call.1} parent=11 // pred_region
          %129 = vsyncadd [#allocation3], 0
          %s130 = sshll.u32 %s2, 4
          %s131 = int_to_ptr.hbm [resolvable:$true] %s130
          %s132 = sshll.u32 [#allocation2], 4
          %s133 = int_to_ptr.vmem [resolvable:$true] %s132
          %138 = dma.hbm_to_vmem [thread:$0]  %s131, 4096, %s133, [#allocation3], 128, 128, 8
        $region20: #{tpu_custom_call.1} parent=11 // pred_fallthru
          _
      $region12: #{tpu_custom_call.1} parent=5 // pred_fallthru
        _
      %p139 = scmp.lt.s32.totalorder %s13, 2
      // Predicated region
      $region21: #{tpu_custom_call.1} parent=5 // pred_check
        %p140 = pneg %p139
      $region22: #{tpu_custom_call.1} parent=5 // pred_check_branch
        %142 = sbr.rel (%p140) target = $region24
      $region23: #{tpu_custom_call.1} parent=5 // pred_region
        // Predicated region
        $region25: #{tpu_custom_call.1} parent=23 // pred_check
          %p143 = pneg %p33
        $region26: #{tpu_custom_call.1} parent=23 // pred_check_branch
          %145 = sbr.rel (%p143) target = $region28
        $region27: #{tpu_custom_call.1} parent=23 // pred_region
          %p146 = scmp.lt.s32.totalorder %s13, 1
          %s147 = scalar_select %p146, %s13, 1
          %s148 = smul.addr %s147, 2
          %s149 = smul.addr %s148, 8
          %s150 = scalar_lea.vmem %s0, %s149
        $region28: #{tpu_custom_call.1} parent=23 // pred_fallthru
          _
      $region24: #{tpu_custom_call.1} parent=5 // pred_fallthru
        _
      %p151 = scmp.le.s32.totalorder 1, %s13
      %p152 = scmp.lt.s32.totalorder %s13, 3
      %p153 = pnand %p151, %p152
      %p154 = pneg %p153
      // Predicated region
      $region29: #{tpu_custom_call.1} parent=5 // pred_check
        _
      $region30: #{tpu_custom_call.1} parent=5 // pred_check_branch
        %156 = sbr.rel (%p153) target = $region32
      $region31: #{tpu_custom_call.1} parent=5 // pred_region
        %s157 = ssub.s32 %s13, 1
        // Predicated region
        $region33: #{tpu_custom_call.1} parent=31 // pred_check
          %p158 = pneg %p81
        $region34: #{tpu_custom_call.1} parent=31 // pred_check_branch
          %160 = sbr.rel (%p158) target = $region36
        $region35: #{tpu_custom_call.1} parent=31 // pred_region
          %162 = dma.done [#allocation3], 4096
        $region36: #{tpu_custom_call.1} parent=31 // pred_fallthru
          _
        %p163 = scmp.lt.s32.totalorder %s18, 1
        %s164 = scalar_select %p163, %s18, 1
        %s165 = smul.addr %s164, 2
        %s166 = smul.addr %s165, 8
        %s167 = scalar_lea.vmem %s0, %s166
        %p168 = pneg %p39
        %p169 = pneg %p36
        %p170 = pneg %p60
        %p171 = pneg %p57
        %p172 = pneg %p81
        %p173 = pneg %p78
        %p174 = pneg %p107
        %p175 = pneg %p104
        %s176 = sand.u32 %s94, 1
        %s177 = scalar_lea.sflag [#allocation4], %s176
        %s178 = sand.u32 %s94, 1
        %s179 = smul.addr %s178, 64
        %s180 = scalar_lea.vmem [#allocation5], %s179
        %p181 = scmp.lt.s32.totalorder %s18, 1
        %s182 = scalar_select %p181, %s18, 1
        %s183 = smul.addr %s182, 2
        %s184 = smul.addr %s183, 8
        %s185 = scalar_lea.vmem %s0, %s184
        %v186 = vld [vmem:[%s185] sm:$0xff]
        %v187 = vld [vmem:[%s185 + $0x8] sm:$0xff]
        %v188 = vld [vmem:[%s1] sm:$0xff]
        %v189 = vld [vmem:[%s1 + $0x8] sm:$0xff]
        %v190 = vld [vmem:[%s1 + $0x10] sm:$0xff]
        %v191 = vld [vmem:[%s1 + $0x18] sm:$0xff]
        %v192 = vld [vmem:[%s1 + $0x20] sm:$0xff]
        %v193 = vld [vmem:[%s1 + $0x28] sm:$0xff]
        %v194 = vld [vmem:[%s1 + $0x30] sm:$0xff]
        %v195 = vld [vmem:[%s1 + $0x38] sm:$0xff]
        %vm196 = vcmask 130048
        %v198 = vsel %vm196, %v188, 0
        %v201 = vsel %vm196, %v189, 0
        %v204 = vsel %vm196, %v190, 0
        %v207 = vsel %vm196, %v191, 0
        %v210 = vsel %vm196, %v192, 0
        %v213 = vsel %vm196, %v193, 0
        %v216 = vsel %vm196, %v194, 0
        %v219 = vsel %vm196, %v195, 0
        %221 = vmatpush.msra.mxu0 0.0
        %222 = vmatpush.msra.mxu0 0.0
        %223 = vmatpush.msra.mxu0 0.0
        %224 = vmatpush.msra.mxu0 0.0
        %225 = vmatpush.msra.mxu0 0.0
        %226 = vmatpush.msra.mxu0 0.0
        %227 = vmatpush.msra.mxu0 0.0
        %228 = vmatpush.msra.mxu0 0.0
        %229 = vmatpush.msra.mxu0 0.0
        %230 = vmatpush.msra.mxu0 0.0
        %231 = vmatpush.msra.mxu0 0.0
        %232 = vmatpush.msra.mxu0 0.0
        %233 = vmatpush.msra.mxu0 0.0
        %234 = vmatpush.msra.mxu0 0.0
        %235 = vmatpush.msra.mxu0 %v187
        %236 = vmatpush.msra.mxu0 %v186
        %237 = vmatmul.f32.gmra.mxu0 %v198
        %v238 = vpop.f32.mrf.mxu0
        %v239 = vadd.f32 0.0, %v238
        %240 = vmatmul.f32.gmra.mxu0 %v201
        %v241 = vpop.f32.mrf.mxu0
        %v242 = vadd.f32 0.0, %v241
        %243 = vmatmul.f32.gmra.mxu0 %v204
        %v244 = vpop.f32.mrf.mxu0
        %v245 = vadd.f32 0.0, %v244
        %246 = vmatmul.f32.gmra.mxu0 %v207
        %v247 = vpop.f32.mrf.mxu0
        %v248 = vadd.f32 0.0, %v247
        %249 = vmatmul.f32.gmra.mxu0 %v210
        %v250 = vpop.f32.mrf.mxu0
        %v251 = vadd.f32 0.0, %v250
        %252 = vmatmul.f32.gmra.mxu0 %v213
        %v253 = vpop.f32.mrf.mxu0
        %v254 = vadd.f32 0.0, %v253
        %255 = vmatmul.f32.gmra.mxu0 %v216
        %v256 = vpop.f32.mrf.mxu0
        %v257 = vadd.f32 0.0, %v256
        %258 = vmatmul.f32.gmra.mxu0 %v219
        %v259 = vpop.f32.mrf.mxu0
        %v260 = vadd.f32 0.0, %v259
        %261 = vdwg.mxu0
        %v262 = vld [vmem:[#allocation2] sm:$0xff]
        %v263 = vld [vmem:[#allocation2 + $0x8] sm:$0xff]
        %v264 = vld [vmem:[#allocation2 + $0x10] sm:$0xff]
        %v265 = vld [vmem:[#allocation2 + $0x18] sm:$0xff]
        %v266 = vld [vmem:[#allocation2 + $0x20] sm:$0xff]
        %v267 = vld [vmem:[#allocation2 + $0x28] sm:$0xff]
        %v268 = vld [vmem:[#allocation2 + $0x30] sm:$0xff]
        %v269 = vld [vmem:[#allocation2 + $0x38] sm:$0xff]
        %vm270 = vcmask 523264
        %v272 = vsel %vm270, %v239, 0
        %v275 = vsel %vm270, %v242, 0
        %277 = vmatpush.msra.mxu0 0.0
        %278 = vmatpush.msra.mxu0 0.0
        %279 = vmatpush.msra.mxu0 0.0
        %280 = vmatpush.msra.mxu0 0.0
        %281 = vmatpush.msra.mxu0 0.0
        %282 = vmatpush.msra.mxu0 0.0
        %283 = vmatpush.msra.mxu0 0.0
        %284 = vmatpush.msra.mxu0 0.0
        %285 = vmatpush.msra.mxu0 %v269
        %286 = vmatpush.msra.mxu0 %v268
        %287 = vmatpush.msra.mxu0 %v267
        %288 = vmatpush.msra.mxu0 %v266
        %289 = vmatpush.msra.mxu0 %v265
        %290 = vmatpush.msra.mxu0 %v264
        %291 = vmatpush.msra.mxu0 %v263
        %292 = vmatpush.msra.mxu0 %v262
        %293 = vmatmul.f32.gmra.mxu0 %v272
        %v294 = vpop.f32.mrf.mxu0
        %v295 = vadd.f32 0.0, %v294
        %296 = vmatmul.f32.gmra.mxu0 %v275
        %v297 = vpop.f32.mrf.mxu0
        %v298 = vadd.f32 0.0, %v297
        %299 = vdwg.mxu0
        %s300 = scalar_lea.vmem [#allocation2], 64
        %v301 = vld [vmem:[%s300] sm:$0xff]
        %v302 = vld [vmem:[%s300 + $0x8] sm:$0xff]
        %v303 = vld [vmem:[%s300 + $0x10] sm:$0xff]
        %v304 = vld [vmem:[%s300 + $0x18] sm:$0xff]
        %v305 = vld [vmem:[%s300 + $0x20] sm:$0xff]
        %v306 = vld [vmem:[%s300 + $0x28] sm:$0xff]
        %v307 = vld [vmem:[%s300 + $0x30] sm:$0xff]
        %v308 = vld [vmem:[%s300 + $0x38] sm:$0xff]
        %v310 = vsel %vm270, %v245, 0
        %v313 = vsel %vm270, %v248, 0
        %315 = vmatpush.msra.mxu0 0.0
        %316 = vmatpush.msra.mxu0 0.0
        %317 = vmatpush.msra.mxu0 0.0
        %318 = vmatpush.msra.mxu0 0.0
        %319 = vmatpush.msra.mxu0 0.0
        %320 = vmatpush.msra.mxu0 0.0
        %321 = vmatpush.msra.mxu0 0.0
        %322 = vmatpush.msra.mxu0 0.0
        %323 = vmatpush.msra.mxu0 %v308
        %324 = vmatpush.msra.mxu0 %v307
        %325 = vmatpush.msra.mxu0 %v306
        %326 = vmatpush.msra.mxu0 %v305
        %327 = vmatpush.msra.mxu0 %v304
        %328 = vmatpush.msra.mxu0 %v303
        %329 = vmatpush.msra.mxu0 %v302
        %330 = vmatpush.msra.mxu0 %v301
        %331 = vmatmul.f32.gmra.mxu0 %v310
        %v332 = vpop.f32.mrf.mxu0
        %v333 = vadd.f32 0.0, %v332
        %334 = vmatmul.f32.gmra.mxu0 %v313
        %v335 = vpop.f32.mrf.mxu0
        %v336 = vadd.f32 0.0, %v335
        %337 = vdwg.mxu0
        %s338 = scalar_lea.vmem [#allocation2], 128
        %v339 = vld [vmem:[%s338] sm:$0xff]
        %v340 = vld [vmem:[%s338 + $0x8] sm:$0xff]
        %v341 = vld [vmem:[%s338 + $0x10] sm:$0xff]
        %v342 = vld [vmem:[%s338 + $0x18] sm:$0xff]
        %v343 = vld [vmem:[%s338 + $0x20] sm:$0xff]
        %v344 = vld [vmem:[%s338 + $0x28] sm:$0xff]
        %v345 = vld [vmem:[%s338 + $0x30] sm:$0xff]
        %v346 = vld [vmem:[%s338 + $0x38] sm:$0xff]
        %v348 = vsel %vm270, %v251, 0
        %v351 = vsel %vm270, %v254, 0
        %353 = vmatpush.msra.mxu0 0.0
        %354 = vmatpush.msra.mxu0 0.0
        %355 = vmatpush.msra.mxu0 0.0
        %356 = vmatpush.msra.mxu0 0.0
        %357 = vmatpush.msra.mxu0 0.0
        %358 = vmatpush.msra.mxu0 0.0
        %359 = vmatpush.msra.mxu0 0.0
        %360 = vmatpush.msra.mxu0 0.0
        %361 = vmatpush.msra.mxu0 %v346
        %362 = vmatpush.msra.mxu0 %v345
        %363 = vmatpush.msra.mxu0 %v344
        %364 = vmatpush.msra.mxu0 %v343
        %365 = vmatpush.msra.mxu0 %v342
        %366 = vmatpush.msra.mxu0 %v341
        %367 = vmatpush.msra.mxu0 %v340
        %368 = vmatpush.msra.mxu0 %v339
        %369 = vmatmul.f32.gmra.mxu0 %v348
        %v370 = vpop.f32.mrf.mxu0
        %v371 = vadd.f32 0.0, %v370
        %372 = vmatmul.f32.gmra.mxu0 %v351
        %v373 = vpop.f32.mrf.mxu0
        %v374 = vadd.f32 0.0, %v373
        %375 = vdwg.mxu0
        %s376 = scalar_lea.vmem [#allocation2], 192
        %v377 = vld [vmem:[%s376] sm:$0xff]
        %v378 = vld [vmem:[%s376 + $0x8] sm:$0xff]
        %v379 = vld [vmem:[%s376 + $0x10] sm:$0xff]
        %v380 = vld [vmem:[%s376 + $0x18] sm:$0xff]
        %v381 = vld [vmem:[%s376 + $0x20] sm:$0xff]
        %v382 = vld [vmem:[%s376 + $0x28] sm:$0xff]
        %v383 = vld [vmem:[%s376 + $0x30] sm:$0xff]
        %v384 = vld [vmem:[%s376 + $0x38] sm:$0xff]
        %v386 = vsel %vm270, %v257, 0
        %v389 = vsel %vm270, %v260, 0
        %391 = vmatpush.msra.mxu0 0.0
        %392 = vmatpush.msra.mxu0 0.0
        %393 = vmatpush.msra.mxu0 0.0
        %394 = vmatpush.msra.mxu0 0.0
        %395 = vmatpush.msra.mxu0 0.0
        %396 = vmatpush.msra.mxu0 0.0
        %397 = vmatpush.msra.mxu0 0.0
        %398 = vmatpush.msra.mxu0 0.0
        %399 = vmatpush.msra.mxu0 %v384
        %400 = vmatpush.msra.mxu0 %v383
        %401 = vmatpush.msra.mxu0 %v382
        %402 = vmatpush.msra.mxu0 %v381
        %403 = vmatpush.msra.mxu0 %v380
        %404 = vmatpush.msra.mxu0 %v379
        %405 = vmatpush.msra.mxu0 %v378
        %406 = vmatpush.msra.mxu0 %v377
        %407 = vmatmul.f32.gmra.mxu0 %v386
        %v408 = vpop.f32.mrf.mxu0
        %v409 = vadd.f32 0.0, %v408
        %410 = vmatmul.f32.gmra.mxu0 %v389
        %v411 = vpop.f32.mrf.mxu0
        %v412 = vadd.f32 0.0, %v411
        %413 = vdwg.mxu0
        %414 = vst.msk [vmem:[%s180] sm:$0xff] %vm270, %v295
        %415 = vst.msk [vmem:[%s180 + $0x8] sm:$0xff] %vm270, %v298
        %416 = vst.msk [vmem:[%s180 + $0x10] sm:$0xff] %vm270, %v333
        %417 = vst.msk [vmem:[%s180 + $0x18] sm:$0xff] %vm270, %v336
        %418 = vst.msk [vmem:[%s180 + $0x20] sm:$0xff] %vm270, %v371
        %419 = vst.msk [vmem:[%s180 + $0x28] sm:$0xff] %vm270, %v374
        %420 = vst.msk [vmem:[%s180 + $0x30] sm:$0xff] %vm270, %v409
        %421 = vst.msk [vmem:[%s180 + $0x38] sm:$0xff] %vm270, %v412
        %s422 = sand.u32 %s94, 1
        %s423 = scalar_lea.sflag [#allocation4], %s422
        %s424 = sand.u32 %s94, 1
        %s425 = smul.addr %s424, 64
        %s426 = scalar_lea.vmem [#allocation5], %s425
        // Predicated region
        $region37: #{tpu_custom_call.1} parent=31 // pred_check
          %p427 = pneg %p104
        $region38: #{tpu_custom_call.1} parent=31 // pred_check_branch
          %429 = sbr.rel (%p427) target = $region40
        $region39: #{tpu_custom_call.1} parent=31 // pred_region
          %431 = vsyncadd %s423, 0
          %s432 = smul.addr %s18, 8
          %s433 = smul.addr %s432, 8
          %s434 = scalar_lea.hbm %s3, %s433
          %s435 = sshll.u32 %s426, 4
          %s436 = int_to_ptr.vmem [resolvable:$true] %s435
          %s437 = sshll.u32 %s434, 4
          %s438 = int_to_ptr.hbm [resolvable:$true] %s437
          %443 = dma.vmem_to_hbm [thread:$0]  %s436, 1024, %s438, %s423, 128, 128, 8
        $region40: #{tpu_custom_call.1} parent=31 // pred_fallthru
          _
      $region32: #{tpu_custom_call.1} parent=5 // pred_fallthru
        _
      %p444 = scmp.le.s32.totalorder 2, %s13
      // Predicated region
      $region41: #{tpu_custom_call.1} parent=5 // pred_check
        %p445 = pneg %p444
      $region42: #{tpu_custom_call.1} parent=5 // pred_check_branch
        %447 = sbr.rel (%p445) target = $region44
      $region43: #{tpu_custom_call.1} parent=5 // pred_region
        %s448 = ssub.s32 %s13, 2
        // Predicated region
        $region45: #{tpu_custom_call.1} parent=43 // pred_check
          %p449 = pneg %p110
        $region46: #{tpu_custom_call.1} parent=43 // pred_check_branch
          %451 = sbr.rel (%p449) target = $region48
        $region47: #{tpu_custom_call.1} parent=43 // pred_region
          %s452 = sand.u32 %s95, 1
          %s453 = scalar_lea.sflag [#allocation4], %s452
          %s454 = sand.u32 %s95, 1
          %s455 = smul.addr %s454, 64
          %s456 = scalar_lea.vmem [#allocation5], %s455
          %458 = dma.done %s453, 1024
        $region48: #{tpu_custom_call.1} parent=43 // pred_fallthru
          _
      $region44: #{tpu_custom_call.1} parent=5 // pred_fallthru
        _
    $region6: #{tpu_custom_call.1} parent=1 // loop_footer
      %s17 = sadd.s32 1, %s13
    $region7: #{tpu_custom_call.1} parent=1 // loop_footer_branch
      %12 = sbr.rel target = $region3
    $region8: #{tpu_custom_call.1} parent=1 // loop_exit
      _
    %459 = vsyncpa [#allocation3], 1
    %s460 = scalar_lea.sflag [#allocation3], 1
    %461 = vsyncpa %s460, 1
    %462 = vsyncpa [#allocation4], 1
    %s463 = scalar_lea.sflag [#allocation4], 1
    %464 = vsyncpa %s463, 1

</llo_original>
